<compile_context>
chip_gen: v6e
topology: v6e:2x2x1
jax: 0.10.0
libtpu: 0.0.40
codegen_flags: <defaults>
</compile_context>

<pallas_src>
import functools

import jax
import jax.numpy as jnp
from jax.experimental import pallas as pl
from jax.experimental.pallas import tpu as pltpu

INPUT_SIZE = 28
HIDDEN_SIZE = 28
OUTPUT_SIZE = 1
COMBINED = INPUT_SIZE + HIDDEN_SIZE      # 56
NOUT = HIDDEN_SIZE + OUTPUT_SIZE         # 29 live output columns
LANE = 128                               # TPU lane width (padded output dim)


def _rnn_tile_kernel(x_ref, h0_ref, wx_ref, wh_ref, b_ref, out_ref, h_ref, *,
                     unroll):
    """One (TILE_T,) tile of the recurrence; hidden carried in VMEM scratch.

    x_ref:  (TILE_T, INPUT_SIZE)  raw inputs (no lane padding on host)
    h0_ref: (1, LANE)             initial hidden (lanes >= HIDDEN_SIZE zero)
    wx_ref: (INPUT_SIZE, LANE)    fused [W_h | W_o], input rows (cols >= NOUT zero)
    wh_ref: (LANE, LANE)          fused [W_h | W_o], hidden rows (rows >= HIDDEN_SIZE
                                  and cols >= NOUT zero)
    b_ref:  (1, LANE)             fused bias [b_h | b_o]
    out_ref:(TILE_T, LANE)        cols [0,HIDDEN) = new hidden, col HIDDEN = sigmoid(out)
    h_ref:  (1, LANE)             VMEM scratch: hidden carried across grid steps
    """
    tile_t = out_ref.shape[0]

    # First tile: seed the carried hidden from the caller-provided h0.
    @pl.when(pl.program_id(0) == 0)
    def _():
        h_ref[...] = h0_ref[...]

    # Hoisted, well-shaped MXU matmul: x_t @ Wx + b for every step of the tile
    # at once, staged directly into the out tile (VMEM).  The serial loop below
    # then only has the h @ Wh dot + one add on its critical path.
    out_ref[...] = (
        jnp.dot(x_ref[...], wx_ref[...], preferred_element_type=jnp.float32)
        + b_ref[...]
    )

    wh = wh_ref[...]                     # resident in vregs for the whole tile

    def step(t, h):
        # Row t of out_ref currently holds x_t @ Wx + b.
        z = out_ref[pl.ds(t, 1), :] + jnp.dot(
            h, wh, preferred_element_type=jnp.float32)         # (1, LANE)
        out_ref[pl.ds(t, 1), :] = z
        # Lanes >= HIDDEN_SIZE of z are annihilated by the zero rows of Wh next
        # step, so carrying the unmasked z as the new hidden is exact.
        return z

    h_ref[...] = jax.lax.fori_loop(0, tile_t, step, h_ref[...], unroll=unroll)

    # Off the serial critical path: one vectorized EUP pass applies the sigmoid
    # to the output-logit column; hidden columns pass through unchanged.
    # NOTE: columns >= NOUT end up holding sigmoid(0) = 0.5 padding junk; the
    # wrapper slices out only the real HIDDEN_SIZE + OUTPUT_SIZE columns.
    col = jax.lax.broadcasted_iota(jnp.int32, (1, LANE), dimension=1)
    slab = out_ref[...]
    out_ref[...] = jnp.where(col < HIDDEN_SIZE, slab, jax.nn.sigmoid(slab))


def _pack_params(wh_t, bh, wo_t, bo):
    """Fuse the two Linear layers into lane-padded weights + one bias row.

    wh_t: (COMBINED, HIDDEN_SIZE)  transposed weight of input_to_hidden
    bh:   (HIDDEN_SIZE,)
    wo_t: (COMBINED, OUTPUT_SIZE)  transposed weight of input_to_output
    bo:   (OUTPUT_SIZE,)
    """
    w_all = jnp.concatenate([wh_t, wo_t], axis=1).astype(jnp.float32)  # (COMBINED, NOUT)
    wx = (jnp.zeros((INPUT_SIZE, LANE), jnp.float32)
          .at[:, :NOUT].set(w_all[:INPUT_SIZE]))
    wh = (jnp.zeros((LANE, LANE), jnp.float32)
          .at[:HIDDEN_SIZE, :NOUT].set(w_all[INPUT_SIZE:]))
    b = (jnp.zeros((1, LANE), jnp.float32)
         .at[0, :HIDDEN_SIZE].set(bh)
         .at[0, HIDDEN_SIZE:NOUT].set(bo))
    return wx, wh, b


@functools.partial(jax.jit, static_argnames=("tile_t", "unroll"))
def rnn_forward(x_seq, h0, wh_t, bh, wo_t, bo, *, tile_t=256, unroll=8):
    """Run the RNN over a whole sequence in ONE pallas_call.

    x_seq: (T, INPUT_SIZE), h0: (HIDDEN_SIZE,)
    Returns (outputs (T, OUTPUT_SIZE), hiddens (T, HIDDEN_SIZE)); hiddens[t] is
    the hidden state after consuming x_seq[t] (hiddens[-1] is the final state).
    """
    T = x_seq.shape[0]
    wx, wh, b = _pack_params(wh_t, bh, wo_t, bo)

    # Tile the sequence axis: bounds VMEM independent of T (~2*TILE_T*128*4 B of
    # double-buffered tiles + ~70 KiB of weights, well under v7x's 64 MiB) and
    # lets Pallas overlap x/out HBM traffic with the recurrence compute.
    tile_t = max(8, min(int(tile_t), pl.cdiv(T, 8) * 8))
    t_pad = pl.cdiv(T, tile_t) * tile_t
    x32 = x_seq.astype(jnp.float32)
    if t_pad != T:
        # Tiny (< tile_t zero rows); padded rows land in slab rows sliced away.
        x32 = jnp.pad(x32, ((0, t_pad - T), (0, 0)))
    h0_pad = jnp.zeros((1, LANE), jnp.float32).at[0, :HIDDEN_SIZE].set(h0)

    n_tiles = t_pad // tile_t
    kernel = functools.partial(_rnn_tile_kernel, unroll=unroll)

    slab = pl.pallas_call(
        kernel,
        out_shape=jax.ShapeDtypeStruct((t_pad, LANE), jnp.float32),
        grid_spec=pltpu.PrefetchScalarGridSpec(
            num_scalar_prefetch=0,
            grid=(n_tiles,),
            in_specs=[
                pl.BlockSpec((tile_t, INPUT_SIZE), lambda i: (i, 0)),  # x tile
                pl.BlockSpec((1, LANE), lambda i: (0, 0)),             # h0
                pl.BlockSpec((INPUT_SIZE, LANE), lambda i: (0, 0)),    # Wx
                pl.BlockSpec((LANE, LANE), lambda i: (0, 0)),          # Wh
                pl.BlockSpec((1, LANE), lambda i: (0, 0)),             # bias
            ],
            out_specs=pl.BlockSpec((tile_t, LANE), lambda i: (i, 0)),
            scratch_shapes=[pltpu.VMEM((1, LANE), jnp.float32)],       # carried hidden
        ),
        compiler_params=pltpu.CompilerParams(
            # Sequence axis carries the hidden state -> strictly sequential.
            dimension_semantics=("arbitrary",),
        ),
    )(x32, h0_pad, wx, wh, b)

    outputs = slab[:T, HIDDEN_SIZE:HIDDEN_SIZE + OUTPUT_SIZE]  # sigmoid already applied
    hiddens = slab[:T, :HIDDEN_SIZE]
    return outputs, hiddens


def rnn_cell(input_param, hidden, wh_t, bh, wo_t, bo):
    """Single-step API matching the PyTorch module's forward(input, hidden)."""
    out, hid = rnn_forward(input_param[None, :], hidden, wh_t, bh, wo_t, bo,
                           tile_t=8, unroll=8)
    return out[0], hid[0]


def init_params(key):
    """nn.Linear default init: U(-1/sqrt(fan_in), 1/sqrt(fan_in)), fan_in=COMBINED.
    Weights stored transposed: (in_features, out_features)."""
    k1, k2, k3, k4 = jax.random.split(key, 4)
    bound = 1.0 / jnp.sqrt(jnp.float32(COMBINED))
    wh_t = jax.random.uniform(k1, (COMBINED, HIDDEN_SIZE), jnp.float32, -bound, bound)
    bh = jax.random.uniform(k2, (HIDDEN_SIZE,), jnp.float32, -bound, bound)
    wo_t = jax.random.uniform(k3, (COMBINED, OUTPUT_SIZE), jnp.float32, -bound, bound)
    bo = jax.random.uniform(k4, (OUTPUT_SIZE,), jnp.float32, -bound, bound)
    return wh_t, bh, wo_t, bo


def init_hidden():
    return jnp.zeros((HIDDEN_SIZE,), jnp.float32)


if __name__ == "__main__":
    key = jax.random.PRNGKey(0)
    pkey, xkey = jax.random.split(key)
    wh_t, bh, wo_t, bo = init_params(pkey)

    T = 16
    x_seq = jax.random.normal(xkey, (T, INPUT_SIZE), jnp.float32)
    h0 = init_hidden()

    # tile_t=8 -> grid of 2 tiles, exercising the cross-tile hidden carry.
    outputs, hiddens = rnn_forward(x_seq, h0, wh_t, bh, wo_t, bo,
                                   tile_t=8, unroll=8)
    outputs, hiddens = jax.block_until_ready((outputs, hiddens))

    # Pure-JAX reference: apply the PyTorch cell semantics step by step.
    ref_outs, ref_hids = [], []
    h = h0
    for t in range(T):
        combined = jnp.concatenate([x_seq[t], h], axis=0)
        h = combined @ wh_t + bh
        o = jax.nn.sigmoid(combined @ wo_t + bo)
        ref_outs.append(o)
        ref_hids.append(h)
    ref_outs = jnp.stack(ref_outs)
    ref_hids = jnp.stack(ref_hids)

    assert outputs.shape == (T, OUTPUT_SIZE) and hiddens.shape == (T, HIDDEN_SIZE)
    assert jnp.allclose(hiddens, ref_hids, atol=1e-4), "hidden mismatch"
    assert jnp.allclose(outputs, ref_outs, atol=1e-4), "output mismatch"

    # Single-step API matches the module's forward() as well.
    o1, h1 = rnn_cell(x_seq[0], h0, wh_t, bh, wo_t, bo)
    o1, h1 = jax.block_until_ready((o1, h1))
    assert jnp.allclose(h1, ref_hids[0], atol=1e-4), "cell hidden mismatch"
    assert jnp.allclose(o1, ref_outs[0], atol=1e-4), "cell output mismatch"

    print("KERNEL_OK")
</pallas_src>

<mosaic_0001>
module attributes {stable_mosaic.version = 11 : i64} {
  func.func @_rnn_tile_kernel(%arg0: i32, %arg1: memref<8x28xf32, #tpu.memory_space<vmem>>, %arg2: memref<1x128xf32, #tpu.memory_space<vmem>>, %arg3: memref<28x128xf32, #tpu.memory_space<vmem>>, %arg4: memref<128x128xf32, #tpu.memory_space<vmem>>, %arg5: memref<1x128xf32, #tpu.memory_space<vmem>>, %arg6: memref<8x128xf32, #tpu.memory_space<vmem>>, %arg7: memref<1x128xf32, #tpu.memory_space<vmem>>) attributes {dimension_semantics = [#tpu.dimension_semantics<arbitrary>], iteration_bounds = array<i64: 2>, scalar_prefetch = 0 : i64, scratch_operands = 1 : i64, tpu.core_type = #tpu.core_type<tc>, window_params = [{transform_indices = @transform_0, window_bounds = array<i64: 8, 28>}, {pipeline_mode = #tpu.pipeline_mode<synchronous>, transform_indices = @transform_1, window_bounds = array<i64: 1, 128>}, {pipeline_mode = #tpu.pipeline_mode<synchronous>, transform_indices = @transform_2, window_bounds = array<i64: 28, 128>}, {pipeline_mode = #tpu.pipeline_mode<synchronous>, transform_indices = @transform_3, window_bounds = array<i64: 128, 128>}, {pipeline_mode = #tpu.pipeline_mode<synchronous>, transform_indices = @transform_4, window_bounds = array<i64: 1, 128>}, {transform_indices = @transform_5, window_bounds = array<i64: 8, 128>}]} {
    %c0_i32 = arith.constant 0 : i32
    %0 = arith.cmpi eq, %arg0, %c0_i32 : i32
    %1 = arith.extui %0 : i1 to i32
    %c0_i32_0 = arith.constant 0 : i32
    %2 = arith.cmpi ne, %1, %c0_i32_0 : i32
    scf.if %2 {
      %c0_44 = arith.constant 0 : index
      %c0_45 = arith.constant 0 : index
      %74 = vector.load %arg2[%c0_44, %c0_45] : memref<1x128xf32, #tpu.memory_space<vmem>>, vector<1x128xf32>
      %c0_46 = arith.constant 0 : index
      %c0_47 = arith.constant 0 : index
      %75 = vector.load %arg7[%c0_46, %c0_47] : memref<1x128xf32, #tpu.memory_space<vmem>>, vector<1x128xf32>
      tpu.vector_store %arg7[%c0_46, %c0_47], %74 {strides = array<i32>} : memref<1x128xf32, #tpu.memory_space<vmem>>, vector<1x128xf32>,
    } else {
    }
    %c0 = arith.constant 0 : index
    %c0_1 = arith.constant 0 : index
    %3 = vector.load %arg1[%c0, %c0_1] : memref<8x28xf32, #tpu.memory_space<vmem>>, vector<8x28xf32>
    %c0_2 = arith.constant 0 : index
    %c0_3 = arith.constant 0 : index
    %4 = vector.load %arg3[%c0_2, %c0_3] : memref<28x128xf32, #tpu.memory_space<vmem>>, vector<28x128xf32>
    %cst = arith.constant dense<0.000000e+00> : vector<8x128xf32>
    %5 = tpu.matmul %3, %4, %cst {dimension_numbers = #tpu.dot_dimension_numbers<[1], [0], [0], [1], [0, 0, 1, 1], [], []>} : vector<8x28xf32>, vector<28x128xf32>, vector<8x128xf32> -> vector<8x128xf32>
    %c0_4 = arith.constant 0 : index
    %c0_5 = arith.constant 0 : index
    %6 = vector.load %arg5[%c0_4, %c0_5] : memref<1x128xf32, #tpu.memory_space<vmem>>, vector<1x128xf32>
    %7 = vector.broadcast %6 : vector<1x128xf32> to vector<8x128xf32>
    %8 = arith.addf %5, %7 : vector<8x128xf32>
    %c0_6 = arith.constant 0 : index
    %c0_7 = arith.constant 0 : index
    %9 = vector.load %arg6[%c0_6, %c0_7] : memref<8x128xf32, #tpu.memory_space<vmem>>, vector<8x128xf32>
    tpu.vector_store %arg6[%c0_6, %c0_7], %8 {strides = array<i32>} : memref<8x128xf32, #tpu.memory_space<vmem>>, vector<8x128xf32>,
    %c0_8 = arith.constant 0 : index
    %c0_9 = arith.constant 0 : index
    %10 = vector.load %arg4[%c0_8, %c0_9] : memref<128x128xf32, #tpu.memory_space<vmem>>, vector<128x128xf32>
    %c0_10 = arith.constant 0 : index
    %c0_11 = arith.constant 0 : index
    %11 = vector.load %arg7[%c0_10, %c0_11] : memref<1x128xf32, #tpu.memory_space<vmem>>, vector<1x128xf32>
    %c0_i32_12 = arith.constant 0 : i32
    %12 = arith.index_cast %c0_i32_12 : i32 to index
    %c0_13 = arith.constant 0 : index
    %13 = vector.load %arg6[%12, %c0_13] : memref<8x128xf32, #tpu.memory_space<vmem>>, vector<1x128xf32>
    %cst_14 = arith.constant dense<0.000000e+00> : vector<1x128xf32>
    %14 = tpu.matmul %11, %10, %cst_14 {dimension_numbers = #tpu.dot_dimension_numbers<[1], [0], [0], [1], [0, 0, 1, 1], [], []>} : vector<1x128xf32>, vector<128x128xf32>, vector<1x128xf32> -> vector<1x128xf32>
    %15 = arith.addf %13, %14 : vector<1x128xf32>
    %16 = arith.index_cast %c0_i32_12 : i32 to index
    %c0_15 = arith.constant 0 : index
    %17 = vector.load %arg6[%16, %c0_15] : memref<8x128xf32, #tpu.memory_space<vmem>>, vector<1x128xf32>
    tpu.vector_store %arg6[%16, %c0_15], %15 {strides = array<i32>} : memref<8x128xf32, #tpu.memory_space<vmem>>, vector<1x128xf32>,
    %c1_i32 = arith.constant 1 : i32
    %18 = arith.index_cast %c1_i32 : i32 to index
    %c0_16 = arith.constant 0 : index
    %19 = vector.load %arg6[%18, %c0_16] : memref<8x128xf32, #tpu.memory_space<vmem>>, vector<1x128xf32>
    %cst_17 = arith.constant dense<0.000000e+00> : vector<1x128xf32>
    %20 = tpu.matmul %15, %10, %cst_17 {dimension_numbers = #tpu.dot_dimension_numbers<[1], [0], [0], [1], [0, 0, 1, 1], [], []>} : vector<1x128xf32>, vector<128x128xf32>, vector<1x128xf32> -> vector<1x128xf32>
    %21 = arith.addf %19, %20 : vector<1x128xf32>
    %22 = arith.index_cast %c1_i32 : i32 to index
    %c0_18 = arith.constant 0 : index
    %23 = vector.load %arg6[%22, %c0_18] : memref<8x128xf32, #tpu.memory_space<vmem>>, vector<1x128xf32>
    tpu.vector_store %arg6[%22, %c0_18], %21 {strides = array<i32>} : memref<8x128xf32, #tpu.memory_space<vmem>>, vector<1x128xf32>,
    %c2_i32 = arith.constant 2 : i32
    %24 = arith.index_cast %c2_i32 : i32 to index
    %c0_19 = arith.constant 0 : index
    %25 = vector.load %arg6[%24, %c0_19] : memref<8x128xf32, #tpu.memory_space<vmem>>, vector<1x128xf32>
    %cst_20 = arith.constant dense<0.000000e+00> : vector<1x128xf32>
    %26 = tpu.matmul %21, %10, %cst_20 {dimension_numbers = #tpu.dot_dimension_numbers<[1], [0], [0], [1], [0, 0, 1, 1], [], []>} : vector<1x128xf32>, vector<128x128xf32>, vector<1x128xf32> -> vector<1x128xf32>
    %27 = arith.addf %25, %26 : vector<1x128xf32>
    %28 = arith.index_cast %c2_i32 : i32 to index
    %c0_21 = arith.constant 0 : index
    %29 = vector.load %arg6[%28, %c0_21] : memref<8x128xf32, #tpu.memory_space<vmem>>, vector<1x128xf32>
    tpu.vector_store %arg6[%28, %c0_21], %27 {strides = array<i32>} : memref<8x128xf32, #tpu.memory_space<vmem>>, vector<1x128xf32>,
    %c3_i32 = arith.constant 3 : i32
    %30 = arith.index_cast %c3_i32 : i32 to index
    %c0_22 = arith.constant 0 : index
    %31 = vector.load %arg6[%30, %c0_22] : memref<8x128xf32, #tpu.memory_space<vmem>>, vector<1x128xf32>
    %cst_23 = arith.constant dense<0.000000e+00> : vector<1x128xf32>
    %32 = tpu.matmul %27, %10, %cst_23 {dimension_numbers = #tpu.dot_dimension_numbers<[1], [0], [0], [1], [0, 0, 1, 1], [], []>} : vector<1x128xf32>, vector<128x128xf32>, vector<1x128xf32> -> vector<1x128xf32>
    %33 = arith.addf %31, %32 : vector<1x128xf32>
    %34 = arith.index_cast %c3_i32 : i32 to index
    %c0_24 = arith.constant 0 : index
    %35 = vector.load %arg6[%34, %c0_24] : memref<8x128xf32, #tpu.memory_space<vmem>>, vector<1x128xf32>
    tpu.vector_store %arg6[%34, %c0_24], %33 {strides = array<i32>} : memref<8x128xf32, #tpu.memory_space<vmem>>, vector<1x128xf32>,
    %c4_i32 = arith.constant 4 : i32
    %36 = arith.index_cast %c4_i32 : i32 to index
    %c0_25 = arith.constant 0 : index
    %37 = vector.load %arg6[%36, %c0_25] : memref<8x128xf32, #tpu.memory_space<vmem>>, vector<1x128xf32>
    %cst_26 = arith.constant dense<0.000000e+00> : vector<1x128xf32>
    %38 = tpu.matmul %33, %10, %cst_26 {dimension_numbers = #tpu.dot_dimension_numbers<[1], [0], [0], [1], [0, 0, 1, 1], [], []>} : vector<1x128xf32>, vector<128x128xf32>, vector<1x128xf32> -> vector<1x128xf32>
    %39 = arith.addf %37, %38 : vector<1x128xf32>
    %40 = arith.index_cast %c4_i32 : i32 to index
    %c0_27 = arith.constant 0 : index
    %41 = vector.load %arg6[%40, %c0_27] : memref<8x128xf32, #tpu.memory_space<vmem>>, vector<1x128xf32>
    tpu.vector_store %arg6[%40, %c0_27], %39 {strides = array<i32>} : memref<8x128xf32, #tpu.memory_space<vmem>>, vector<1x128xf32>,
    %c5_i32 = arith.constant 5 : i32
    %42 = arith.index_cast %c5_i32 : i32 to index
    %c0_28 = arith.constant 0 : index
    %43 = vector.load %arg6[%42, %c0_28] : memref<8x128xf32, #tpu.memory_space<vmem>>, vector<1x128xf32>
    %cst_29 = arith.constant dense<0.000000e+00> : vector<1x128xf32>
    %44 = tpu.matmul %39, %10, %cst_29 {dimension_numbers = #tpu.dot_dimension_numbers<[1], [0], [0], [1], [0, 0, 1, 1], [], []>} : vector<1x128xf32>, vector<128x128xf32>, vector<1x128xf32> -> vector<1x128xf32>
    %45 = arith.addf %43, %44 : vector<1x128xf32>
    %46 = arith.index_cast %c5_i32 : i32 to index
    %c0_30 = arith.constant 0 : index
    %47 = vector.load %arg6[%46, %c0_30] : memref<8x128xf32, #tpu.memory_space<vmem>>, vector<1x128xf32>
    tpu.vector_store %arg6[%46, %c0_30], %45 {strides = array<i32>} : memref<8x128xf32, #tpu.memory_space<vmem>>, vector<1x128xf32>,
    %c6_i32 = arith.constant 6 : i32
    %48 = arith.index_cast %c6_i32 : i32 to index
    %c0_31 = arith.constant 0 : index
    %49 = vector.load %arg6[%48, %c0_31] : memref<8x128xf32, #tpu.memory_space<vmem>>, vector<1x128xf32>
    %cst_32 = arith.constant dense<0.000000e+00> : vector<1x128xf32>
    %50 = tpu.matmul %45, %10, %cst_32 {dimension_numbers = #tpu.dot_dimension_numbers<[1], [0], [0], [1], [0, 0, 1, 1], [], []>} : vector<1x128xf32>, vector<128x128xf32>, vector<1x128xf32> -> vector<1x128xf32>
    %51 = arith.addf %49, %50 : vector<1x128xf32>
    %52 = arith.index_cast %c6_i32 : i32 to index
    %c0_33 = arith.constant 0 : index
    %53 = vector.load %arg6[%52, %c0_33] : memref<8x128xf32, #tpu.memory_space<vmem>>, vector<1x128xf32>
    tpu.vector_store %arg6[%52, %c0_33], %51 {strides = array<i32>} : memref<8x128xf32, #tpu.memory_space<vmem>>, vector<1x128xf32>,
    %c7_i32 = arith.constant 7 : i32
    %54 = arith.index_cast %c7_i32 : i32 to index
    %c0_34 = arith.constant 0 : index
    %55 = vector.load %arg6[%54, %c0_34] : memref<8x128xf32, #tpu.memory_space<vmem>>, vector<1x128xf32>
    %cst_35 = arith.constant dense<0.000000e+00> : vector<1x128xf32>
    %56 = tpu.matmul %51, %10, %cst_35 {dimension_numbers = #tpu.dot_dimension_numbers<[1], [0], [0], [1], [0, 0, 1, 1], [], []>} : vector<1x128xf32>, vector<128x128xf32>, vector<1x128xf32> -> vector<1x128xf32>
    %57 = arith.addf %55, %56 : vector<1x128xf32>
    %58 = arith.index_cast %c7_i32 : i32 to index
    %c0_36 = arith.constant 0 : index
    %59 = vector.load %arg6[%58, %c0_36] : memref<8x128xf32, #tpu.memory_space<vmem>>, vector<1x128xf32>
    tpu.vector_store %arg6[%58, %c0_36], %57 {strides = array<i32>} : memref<8x128xf32, #tpu.memory_space<vmem>>, vector<1x128xf32>,
    %c8_i32 = arith.constant 8 : i32
    %c0_37 = arith.constant 0 : index
    %c0_38 = arith.constant 0 : index
    %60 = vector.load %arg7[%c0_37, %c0_38] : memref<1x128xf32, #tpu.memory_space<vmem>>, vector<1x128xf32>
    tpu.vector_store %arg7[%c0_37, %c0_38], %57 {strides = array<i32>} : memref<1x128xf32, #tpu.memory_space<vmem>>, vector<1x128xf32>,
    %61 = tpu.iota {dimensions = array<i32: 1>} : vector<1x128xi32>
    %c0_39 = arith.constant 0 : index
    %c0_40 = arith.constant 0 : index
    %62 = vector.load %arg6[%c0_39, %c0_40] : memref<8x128xf32, #tpu.memory_space<vmem>>, vector<8x128xf32>
    %c28_i32 = arith.constant 28 : i32
    %63 = vector.broadcast %c28_i32 : i32 to vector<1x128xi32>
    %64 = arith.cmpi slt, %61, %63 : vector<1x128xi32>
    %65 = arith.negf %62 : vector<8x128xf32>
    %66 = math.exp %65 : vector<8x128xf32>
    %cst_41 = arith.constant 1.000000e+00 : f32
    %67 = vector.broadcast %cst_41 : f32 to vector<8x128xf32>
    %68 = arith.addf %67, %66 : vector<8x128xf32>
    %69 = arith.divf %67, %68 : vector<8x128xf32>
    %70 = vector.shape_cast %64 : vector<1x128xi1> to vector<1x128xi1>
    %71 = vector.broadcast %70 : vector<1x128xi1> to vector<8x128xi1>
    %72 = arith.select %71, %62, %69 : vector<8x128xi1>, vector<8x128xf32>
    %c0_42 = arith.constant 0 : index
    %c0_43 = arith.constant 0 : index
    %73 = vector.load %arg6[%c0_42, %c0_43] : memref<8x128xf32, #tpu.memory_space<vmem>>, vector<8x128xf32>
    tpu.vector_store %arg6[%c0_42, %c0_43], %72 {strides = array<i32>} : memref<8x128xf32, #tpu.memory_space<vmem>>, vector<8x128xf32>,
    return
  }
  func.func @transform_0(%arg0: i32) -> (i32, i32) {
    %c0_i32 = arith.constant 0 : i32
    %c0_i32_0 = arith.constant 0 : i32
    return %arg0, %c0_i32 : i32, i32
  }
  func.func @transform_1(%arg0: i32) -> (i32, i32) {
    %c0_i32 = arith.constant 0 : i32
    %c0_i32_0 = arith.constant 0 : i32
    %c0_i32_1 = arith.constant 0 : i32
    return %c0_i32, %c0_i32_0 : i32, i32
  }
  func.func @transform_2(%arg0: i32) -> (i32, i32) {
    %c0_i32 = arith.constant 0 : i32
    %c0_i32_0 = arith.constant 0 : i32
    %c0_i32_1 = arith.constant 0 : i32
    return %c0_i32, %c0_i32_0 : i32, i32
  }
  func.func @transform_3(%arg0: i32) -> (i32, i32) {
    %c0_i32 = arith.constant 0 : i32
    %c0_i32_0 = arith.constant 0 : i32
    %c0_i32_1 = arith.constant 0 : i32
    return %c0_i32, %c0_i32_0 : i32, i32
  }
  func.func @transform_4(%arg0: i32) -> (i32, i32) {
    %c0_i32 = arith.constant 0 : i32
    %c0_i32_0 = arith.constant 0 : i32
    %c0_i32_1 = arith.constant 0 : i32
    return %c0_i32, %c0_i32_0 : i32, i32
  }
  func.func @transform_5(%arg0: i32) -> (i32, i32) {
    %c0_i32 = arith.constant 0 : i32
    %c0_i32_0 = arith.constant 0 : i32
    return %arg0, %c0_i32 : i32, i32
  }
}

</mosaic_0001>

<llo_original>
// kernel: rnn_forward.1
$region0: #{rnn_forward.1}
  #allocation0 [shape = 'u32[]', space=smem, size = 0x4, offset = 0x4, fixed_abs, tag = 'smem constant byte address 0x4 - core index']
  #allocation1 [shape = 'u32[144,128]{1,0:T(1,128)}', space=vmem, size = 0x12000, scoped, tag = 'internal scratch']
  #allocation2 [shape = 'f32[1,128]{1,0:T(1,128)}', space=vmem, size = 0x200, scoped, tag = 'scratch operand']
  %s0 = inlined_call_operand.vmem [shape: f32[16,28], index: 0, kind: input, shape index: {}]
  %s1 = inlined_call_operand.vmem [shape: f32[1,128], index: 1, kind: input, shape index: {}]
  %s2 = inlined_call_operand.vmem [shape: f32[28,128], index: 2, kind: input, shape index: {}]
  %s3 = inlined_call_operand.vmem [shape: f32[128,128], index: 3, kind: input, shape index: {}]
  %s4 = inlined_call_operand.vmem [shape: f32[1,128], index: 4, kind: input, shape index: {}]
  %s5 = inlined_call_operand.vmem [shape: f32[16,128], index: 5, kind: output, shape index: {}]
  %s6 = sld [smem:[#allocation0]]
  $region57: #{rnn_forward.1} parent=0
    _
  %s8 = ssub.s32 1, %s6
  %s9 = scalar_select 0, %s8, %s6
  loop: start=0, step=1, limit=4
  $region2: #{rnn_forward.1} parent=0 // loop_pre_header
    _
  $region3: #{rnn_forward.1} parent=0 // loop_header
    %s11 = sphi 0, %s15
    %p12 = scmp.ge.s32.totalorder %s11, 4
    %s21 = sphi 0, %s23
    %s24 = sphi 0, %s21
    %s25 = sphi 0, %s24
    %s41 = sphi 0, %s25
    %s45 = sphi 0, %s45
    %s47 = sphi 0, %s45
    %s48 = sphi 0, %s47
    %s62 = sphi 0, %s48
    %s66 = sphi 0, %s66
    %s68 = sphi 0, %s66
    %s69 = sphi 0, %s68
    %s83 = sphi 0, %s69
    %s87 = sphi 0, %s87
    %s89 = sphi 0, %s87
    %s90 = sphi 0, %s89
    %s104 = sphi 0, %s90
    %s108 = sphi 0, %s108
    %s110 = sphi 0, %s108
    %s111 = sphi 0, %s110
    %s125 = sphi 0, %s111
    %s131 = sphi 0, %s133
    %s134 = sphi 0, %s131
    %s135 = sphi 0, %s134
    %s151 = sphi 0, %s135
  $region4: #{rnn_forward.1} parent=0 // loop_header_branch
    %14 = sbr.rel (%p12) target = $region8
  $region5: #{rnn_forward.1} parent=0 // loop_body
    %s16 = ssub.s32 %s11, 1
    %s17 = ssub.s32 %s11, 2
    %s18 = sadd.s32 %s11, 1
    %s19 = ssub.s32 %s11, %s18
    %p20 = scmp.eq.s32.totalorder %s19, 0
    %s22 = sadd.s32 %s21, 1
    %s23 = scalar_select %p20, %s21, %s22
    %p26 = pneg %p20
    %p27 = scmp.eq.s32.totalorder %s11, 1
    %p28 = por %p26, %p27
    %p29 = scmp.ne.s32.totalorder %s21, %s24
    %p30 = scmp.eq.s32.totalorder %s11, 0
    %p31 = por %p29, %p30
    %p32 = scmp.ne.s32.totalorder %s21, %s24
    %p33 = scmp.eq.s32.totalorder %s16, 1
    %p34 = por %p32, %p33
    %p35 = scmp.ne.s32.totalorder %s24, %s25
    %p36 = scmp.eq.s32.totalorder %s16, 0
    %p37 = por %p35, %p36
    %p38 = scmp.ne.s32.totalorder %s24, %s25
    %p39 = scmp.eq.s32.totalorder %s17, 1
    %p40 = por %p38, %p39
    %p42 = scmp.ne.s32.totalorder %s25, %s41
    %p43 = scmp.eq.s32.totalorder %s17, 0
    %p44 = por %p42, %p43
    %s46 = sadd.s32 %s45, 1
    %p49 = scmp.eq.s32.totalorder %s11, 1
    %p50 = scmp.ne.s32.totalorder %s45, %s47
    %p51 = scmp.eq.s32.totalorder %s11, 0
    %p52 = por %p50, %p51
    %p53 = scmp.ne.s32.totalorder %s45, %s47
    %p54 = scmp.eq.s32.totalorder %s16, 1
    %p55 = por %p53, %p54
    %p56 = scmp.ne.s32.totalorder %s47, %s48
    %p57 = scmp.eq.s32.totalorder %s16, 0
    %p58 = por %p56, %p57
    %p59 = scmp.ne.s32.totalorder %s47, %s48
    %p60 = scmp.eq.s32.totalorder %s17, 1
    %p61 = por %p59, %p60
    %p63 = scmp.ne.s32.totalorder %s48, %s62
    %p64 = scmp.eq.s32.totalorder %s17, 0
    %p65 = por %p63, %p64
    %s67 = sadd.s32 %s66, 1
    %p70 = scmp.eq.s32.totalorder %s11, 1
    %p71 = scmp.ne.s32.totalorder %s66, %s68
    %p72 = scmp.eq.s32.totalorder %s11, 0
    %p73 = por %p71, %p72
    %p74 = scmp.ne.s32.totalorder %s66, %s68
    %p75 = scmp.eq.s32.totalorder %s16, 1
    %p76 = por %p74, %p75
    %p77 = scmp.ne.s32.totalorder %s68, %s69
    %p78 = scmp.eq.s32.totalorder %s16, 0
    %p79 = por %p77, %p78
    %p80 = scmp.ne.s32.totalorder %s68, %s69
    %p81 = scmp.eq.s32.totalorder %s17, 1
    %p82 = por %p80, %p81
    %p84 = scmp.ne.s32.totalorder %s69, %s83
    %p85 = scmp.eq.s32.totalorder %s17, 0
    %p86 = por %p84, %p85
    %s88 = sadd.s32 %s87, 1
    %p91 = scmp.eq.s32.totalorder %s11, 1
    %p92 = scmp.ne.s32.totalorder %s87, %s89
    %p93 = scmp.eq.s32.totalorder %s11, 0
    %p94 = por %p92, %p93
    %p95 = scmp.ne.s32.totalorder %s87, %s89
    %p96 = scmp.eq.s32.totalorder %s16, 1
    %p97 = por %p95, %p96
    %p98 = scmp.ne.s32.totalorder %s89, %s90
    %p99 = scmp.eq.s32.totalorder %s16, 0
    %p100 = por %p98, %p99
    %p101 = scmp.ne.s32.totalorder %s89, %s90
    %p102 = scmp.eq.s32.totalorder %s17, 1
    %p103 = por %p101, %p102
    %p105 = scmp.ne.s32.totalorder %s90, %s104
    %p106 = scmp.eq.s32.totalorder %s17, 0
    %p107 = por %p105, %p106
    %s109 = sadd.s32 %s108, 1
    %p112 = scmp.eq.s32.totalorder %s11, 1
    %p113 = scmp.ne.s32.totalorder %s108, %s110
    %p114 = scmp.eq.s32.totalorder %s11, 0
    %p115 = por %p113, %p114
    %p116 = scmp.ne.s32.totalorder %s108, %s110
    %p117 = scmp.eq.s32.totalorder %s16, 1
    %p118 = por %p116, %p117
    %p119 = scmp.ne.s32.totalorder %s110, %s111
    %p120 = scmp.eq.s32.totalorder %s16, 0
    %p121 = por %p119, %p120
    %p122 = scmp.ne.s32.totalorder %s110, %s111
    %p123 = scmp.eq.s32.totalorder %s17, 1
    %p124 = por %p122, %p123
    %p126 = scmp.ne.s32.totalorder %s111, %s125
    %p127 = scmp.eq.s32.totalorder %s17, 0
    %p128 = por %p126, %p127
    %s129 = ssub.s32 %s11, %s18
    %p130 = scmp.eq.s32.totalorder %s129, 0
    %s132 = sadd.s32 %s131, 1
    %s133 = scalar_select %p130, %s131, %s132
    %p136 = pneg %p130
    %p137 = scmp.eq.s32.totalorder %s11, 1
    %p138 = por %p136, %p137
    %p139 = scmp.ne.s32.totalorder %s131, %s134
    %p140 = scmp.eq.s32.totalorder %s11, 0
    %p141 = por %p139, %p140
    %p142 = scmp.ne.s32.totalorder %s131, %s134
    %p143 = scmp.eq.s32.totalorder %s16, 1
    %p144 = por %p142, %p143
    %p145 = scmp.ne.s32.totalorder %s134, %s135
    %p146 = scmp.eq.s32.totalorder %s16, 0
    %p147 = por %p145, %p146
    %p148 = scmp.ne.s32.totalorder %s134, %s135
    %p149 = scmp.eq.s32.totalorder %s17, 1
    %p150 = por %p148, %p149
    %p152 = scmp.ne.s32.totalorder %s135, %s151
    %p153 = scmp.eq.s32.totalorder %s17, 0
    %p154 = por %p152, %p153
    %p155 = scmp.le.s32.totalorder 1, %s11
    %p156 = scmp.lt.s32.totalorder %s11, 3
    %p157 = pnand %p155, %p156
    %p158 = pneg %p157
    // Predicated region
    $region9: #{rnn_forward.1} parent=5 // pred_check
      _
    $region10: #{rnn_forward.1} parent=5 // pred_check_branch
      %160 = sbr.rel (%p157) target = $region12
    $region11: #{rnn_forward.1} parent=5 // pred_region
      %s161 = ssub.s32 %s11, 1
      // Predicated region
      $region13: #{rnn_forward.1} parent=11 // pred_check
        %p162 = pneg %p58
      $region14: #{rnn_forward.1} parent=11 // pred_check_branch
        %164 = sbr.rel (%p162) target = $region16
      $region15: #{rnn_forward.1} parent=11 // pred_region
        _
      $region16: #{rnn_forward.1} parent=11 // pred_fallthru
        _
      // Predicated region
      $region17: #{rnn_forward.1} parent=11 // pred_check
        %p165 = pneg %p79
      $region18: #{rnn_forward.1} parent=11 // pred_check_branch
        %167 = sbr.rel (%p165) target = $region20
      $region19: #{rnn_forward.1} parent=11 // pred_region
        _
      $region20: #{rnn_forward.1} parent=11 // pred_fallthru
        _
      // Predicated region
      $region21: #{rnn_forward.1} parent=11 // pred_check
        %p168 = pneg %p100
      $region22: #{rnn_forward.1} parent=11 // pred_check_branch
        %170 = sbr.rel (%p168) target = $region24
      $region23: #{rnn_forward.1} parent=11 // pred_region
        _
      $region24: #{rnn_forward.1} parent=11 // pred_fallthru
        _
      // Predicated region
      $region25: #{rnn_forward.1} parent=11 // pred_check
        %p171 = pneg %p121
      $region26: #{rnn_forward.1} parent=11 // pred_check_branch
        %173 = sbr.rel (%p171) target = $region28
      $region27: #{rnn_forward.1} parent=11 // pred_region
        _
      $region28: #{rnn_forward.1} parent=11 // pred_fallthru
        _
    $region12: #{rnn_forward.1} parent=5 // pred_fallthru
      _
    %p174 = scmp.lt.s32.totalorder %s11, 2
    // Predicated region
    $region29: #{rnn_forward.1} parent=5 // pred_check
      %p175 = pneg %p174
    $region30: #{rnn_forward.1} parent=5 // pred_check_branch
      %177 = sbr.rel (%p175) target = $region32
    $region31: #{rnn_forward.1} parent=5 // pred_region
      // Predicated region
      $region33: #{rnn_forward.1} parent=31 // pred_check
        %p178 = pneg %p31
      $region34: #{rnn_forward.1} parent=31 // pred_check_branch
        %180 = sbr.rel (%p178) target = $region36
      $region35: #{rnn_forward.1} parent=31 // pred_region
        %p181 = scmp.lt.s32.totalorder %s11, 1
        %s182 = scalar_select %p181, %s11, 1
        %s183 = smul.addr %s182, 8
        %s184 = scalar_lea.vmem %s0, %s183
      $region36: #{rnn_forward.1} parent=31 // pred_fallthru
        _
    $region32: #{rnn_forward.1} parent=5 // pred_fallthru
      _
    %p185 = scmp.le.s32.totalorder 1, %s11
    %p186 = scmp.lt.s32.totalorder %s11, 3
    %p187 = pnand %p185, %p186
    %p188 = pneg %p187
    // Predicated region
    $region37: #{rnn_forward.1} parent=5 // pred_check
      _
    $region38: #{rnn_forward.1} parent=5 // pred_check_branch
      %190 = sbr.rel (%p187) target = $region40
    $region39: #{rnn_forward.1} parent=5 // pred_region
      %s191 = ssub.s32 %s11, 1
      %p192 = scmp.lt.s32.totalorder %s16, 1
      %s193 = scalar_select %p192, %s16, 1
      %s194 = smul.addr %s193, 8
      %s195 = scalar_lea.vmem %s0, %s194
      %p196 = pneg %p37
      %p197 = pneg %p34
      %p198 = pneg %p58
      %p199 = pneg %p55
      %p200 = pneg %p79
      %p201 = pneg %p76
      %p202 = pneg %p100
      %p203 = pneg %p97
      %p204 = pneg %p121
      %p205 = pneg %p118
      %p206 = pneg %p147
      %p207 = pneg %p144
      %p208 = scmp.lt.s32.totalorder %s16, 1
      %s209 = scalar_select %p208, %s16, 1
      %s210 = smul.addr %s209, 8
      %s211 = scalar_lea.vmem %s5, %s210
      %p212 = scmp.lt.s32.totalorder %s16, 1
      %s213 = scalar_select %p212, %s16, 1
      %s214 = smul.addr %s213, 8
      %s215 = scalar_lea.vmem %s0, %s214
      %p216 = scmp.lt.s32.totalorder %s16, 1
      %s217 = scalar_select %p216, %s16, 1
      %s218 = smul.addr %s217, 8
      %s219 = scalar_lea.vmem %s5, %s218
      %p220 = scmp.eq.s32.totalorder %s16, 0
      // Predicated region
      $region41: #{rnn_forward.1} parent=39 // pred_check
        %p221 = pneg %p220
      $region42: #{rnn_forward.1} parent=39 // pred_check_branch
        %223 = sbr.rel (%p221) target = $region44
      $region43: #{rnn_forward.1} parent=39 // pred_region
        %v224 = vld [vmem:[%s1] sm:$0x1]
        %225 = vst [vmem:[#allocation2] sm:$0x1] %v224
      $region44: #{rnn_forward.1} parent=39 // pred_fallthru
        _
      %v226 = vld [vmem:[%s215] sm:$0xff]
      %v227 = vld [vmem:[%s2] sm:$0xff]
      %v228 = vld [vmem:[%s2 + $0x8] sm:$0xff]
      %v229 = vld [vmem:[%s2 + $0x10] sm:$0xff]
      %v230 = vld [vmem:[%s2 + $0x18] sm:$0xf]
      %v231 = vld [vmem:[%s4] sm:$0x1]
      %v233 = vlaneseq
      %v234 = vshrl.u32 %v233, 7
      %v235 = vsub.s32 0, %v234
      %v236 = vrot.slane %v231, %v235
      %vm238 = vcmask 228352
      %v240 = vsel %vm238, %v226, 0
      %vm242 = vcmask 1043456
      %v244 = vsel %vm242, %v230, 0
      %246 = vmatprep.subr.mxu0 0.0
      %247 = vmatpush1.msra.mxu0 0.0
      %248 = vmatprep.subr.mxu0 0.0
      %249 = vmatpush1.msra.mxu0 0.0
      %250 = vmatprep.subr.mxu0 0.0
      %251 = vmatpush1.msra.mxu0 0.0
      %252 = vmatprep.subr.mxu0 0.0
      %253 = vmatpush1.msra.mxu0 0.0
      %254 = vmatprep.subr.mxu0 0.0
      %255 = vmatpush1.msra.mxu0 0.0
      %256 = vmatprep.subr.mxu0 0.0
      %257 = vmatpush1.msra.mxu0 0.0
      %258 = vmatprep.subr.mxu0 0.0
      %259 = vmatpush1.msra.mxu0 0.0
      %260 = vmatprep.subr.mxu0 0.0
      %261 = vmatpush1.msra.mxu0 0.0
      %262 = vmatprep.subr.mxu0 0.0
      %263 = vmatpush1.msra.mxu0 0.0
      %264 = vmatprep.subr.mxu0 0.0
      %265 = vmatpush1.msra.mxu0 0.0
      %266 = vmatprep.subr.mxu0 0.0
      %267 = vmatpush1.msra.mxu0 0.0
      %268 = vmatprep.subr.mxu0 0.0
      %269 = vmatpush1.msra.mxu0 0.0
      %270 = vmatprep.subr.mxu0 0.0
      %271 = vmatpush1.msra.mxu0 %v244
      %272 = vmatprep.subr.mxu0 0.0
      %273 = vmatpush1.msra.mxu0 %v229
      %274 = vmatprep.subr.mxu0 0.0
      %275 = vmatpush1.msra.mxu0 %v228
      %276 = vmatprep.subr.mxu0 0.0
      %277 = vmatpush1.msra.mxu0 %v227
      %278 = vmatprep.subr.mxu0 0.0
      %279 = vmatpush2.msra.mxu0 0.0
      %280 = vmatprep.subr.mxu0 0.0
      %281 = vmatpush2.msra.mxu0 0.0
      %282 = vmatprep.subr.mxu0 0.0
      %283 = vmatpush2.msra.mxu0 0.0
      %284 = vmatprep.subr.mxu0 0.0
      %285 = vmatpush2.msra.mxu0 0.0
      %286 = vmatprep.subr.mxu0 0.0
      %287 = vmatpush2.msra.mxu0 0.0
      %288 = vmatprep.subr.mxu0 0.0
      %289 = vmatpush2.msra.mxu0 0.0
      %290 = vmatprep.subr.mxu0 0.0
      %291 = vmatpush2.msra.mxu0 0.0
      %292 = vmatprep.subr.mxu0 0.0
      %293 = vmatpush2.msra.mxu0 0.0
      %294 = vmatprep.subr.mxu0 0.0
      %295 = vmatpush2.msra.mxu0 0.0
      %296 = vmatprep.subr.mxu0 0.0
      %297 = vmatpush2.msra.mxu0 0.0
      %298 = vmatprep.subr.mxu0 0.0
      %299 = vmatpush2.msra.mxu0 0.0
      %300 = vmatprep.subr.mxu0 0.0
      %301 = vmatpush2.msra.mxu0 0.0
      %302 = vmatprep.subr.mxu0 0.0
      %303 = vmatpush2.msra.mxu0 0.0
      %304 = vmatprep.subr.mxu0 0.0
      %305 = vmatpush2.msra.mxu0 0.0
      %306 = vmatprep.subr.mxu0 0.0
      %307 = vmatpush2.msra.mxu0 0.0
      %308 = vmatprep.subr.mxu0 0.0
      %309 = vmatpush2.msra.mxu0 0.0
      %310 = vmatprep.mubr.f32.mxu0 0.0
      %311 = vmatmul.mubr.f32.gmra.mxu0 %v240
      %v312 = vpop.f32.mrf.mxu0
      %v313 = vadd.f32 %v236, %v312
      %v314 = vpop.f32.mrf.mxu0
      %315 = vdwg.mxu0
      %316 = vst [vmem:[%s219] sm:$0xff] %v313
      %v317 = vld [vmem:[%s3] sm:$0xff]
      %v318 = vld [vmem:[%s3 + $0x8] sm:$0xff]
      %v319 = vld [vmem:[%s3 + $0x10] sm:$0xff]
      %v320 = vld [vmem:[%s3 + $0x18] sm:$0xff]
      %v321 = vld [vmem:[%s3 + $0x20] sm:$0xff]
      %v322 = vld [vmem:[%s3 + $0x28] sm:$0xff]
      %v323 = vld [vmem:[%s3 + $0x30] sm:$0xff]
      %v324 = vld [vmem:[%s3 + $0x38] sm:$0xff]
      %v325 = vld [vmem:[%s3 + $0x40] sm:$0xff]
      %v326 = vld [vmem:[%s3 + $0x48] sm:$0xff]
      %v327 = vld [vmem:[%s3 + $0x50] sm:$0xff]
      %v328 = vld [vmem:[%s3 + $0x58] sm:$0xff]
      %v329 = vld [vmem:[%s3 + $0x60] sm:$0xff]
      %v330 = vld [vmem:[%s3 + $0x68] sm:$0xff]
      %v331 = vld [vmem:[%s3 + $0x70] sm:$0xff]
      %v332 = vld [vmem:[%s3 + $0x78] sm:$0xff]
      %v333 = vld [vmem:[#allocation2] sm:$0x1]
      %v334 = vld [vmem:[%s219] sm:$0x1]
      %335 = vmatprep.subr.mxu0 0.0
      %336 = vmatpush1.msra.mxu0 %v332
      %337 = vmatprep.subr.mxu0 0.0
      %338 = vmatpush1.msra.mxu0 %v331
      %339 = vmatprep.subr.mxu0 0.0
      %340 = vmatpush1.msra.mxu0 %v330
      %341 = vmatprep.subr.mxu0 0.0
      %342 = vmatpush1.msra.mxu0 %v329
      %343 = vmatprep.subr.mxu0 0.0
      %344 = vmatpush1.msra.mxu0 %v328
      %345 = vmatprep.subr.mxu0 0.0
      %346 = vmatpush1.msra.mxu0 %v327
      %347 = vmatprep.subr.mxu0 0.0
      %348 = vmatpush1.msra.mxu0 %v326
      %349 = vmatprep.subr.mxu0 0.0
      %350 = vmatpush1.msra.mxu0 %v325
      %351 = vmatprep.subr.mxu0 0.0
      %352 = vmatpush1.msra.mxu0 %v324
      %353 = vmatprep.subr.mxu0 0.0
      %354 = vmatpush1.msra.mxu0 %v323
      %355 = vmatprep.subr.mxu0 0.0
      %356 = vmatpush1.msra.mxu0 %v322
      %357 = vmatprep.subr.mxu0 0.0
      %358 = vmatpush1.msra.mxu0 %v321
      %359 = vmatprep.subr.mxu0 0.0
      %360 = vmatpush1.msra.mxu0 %v320
      %361 = vmatprep.subr.mxu0 0.0
      %362 = vmatpush1.msra.mxu0 %v319
      %363 = vmatprep.subr.mxu0 0.0
      %364 = vmatpush1.msra.mxu0 %v318
      %365 = vmatprep.subr.mxu0 0.0
      %366 = vmatpush1.msra.mxu0 %v317
      %367 = vmatprep.subr.mxu0 0.0
      %368 = vmatpush2.msra.mxu0 0.0
      %369 = vmatprep.subr.mxu0 0.0
      %370 = vmatpush2.msra.mxu0 0.0
      %371 = vmatprep.subr.mxu0 0.0
      %372 = vmatpush2.msra.mxu0 0.0
      %373 = vmatprep.subr.mxu0 0.0
      %374 = vmatpush2.msra.mxu0 0.0
      %375 = vmatprep.subr.mxu0 0.0
      %376 = vmatpush2.msra.mxu0 0.0
      %377 = vmatprep.subr.mxu0 0.0
      %378 = vmatpush2.msra.mxu0 0.0
      %379 = vmatprep.subr.mxu0 0.0
      %380 = vmatpush2.msra.mxu0 0.0
      %381 = vmatprep.subr.mxu0 0.0
      %382 = vmatpush2.msra.mxu0 0.0
      %383 = vmatprep.subr.mxu0 0.0
      %384 = vmatpush2.msra.mxu0 0.0
      %385 = vmatprep.subr.mxu0 0.0
      %386 = vmatpush2.msra.mxu0 0.0
      %387 = vmatprep.subr.mxu0 0.0
      %388 = vmatpush2.msra.mxu0 0.0
      %389 = vmatprep.subr.mxu0 0.0
      %390 = vmatpush2.msra.mxu0 0.0
      %391 = vmatprep.subr.mxu0 0.0
      %392 = vmatpush2.msra.mxu0 0.0
      %393 = vmatprep.subr.mxu0 0.0
      %394 = vmatpush2.msra.mxu0 0.0
      %395 = vmatprep.subr.mxu0 0.0
      %396 = vmatpush2.msra.mxu0 0.0
      %397 = vmatprep.subr.mxu0 0.0
      %398 = vmatpush2.msra.mxu0 0.0
      %399 = vmatprep.mubr.f32.mxu0 0.0
      %400 = vmatmul.mubr.f32.gmra.mxu0 %v333
      %v401 = vpop.f32.mrf.mxu0
      %v402 = vadd.f32 0.0, %v401
      %v403 = vpop.f32.mrf.mxu0
      %404 = vdwg.mxu0
      %v405 = vadd.f32 %v334, %v402
      %406 = vst [vmem:[%s219] sm:$0x1] %v405
      %v407 = vld [vmem:[%s219 + $0x1] sm:$0x1]
      %408 = vmatprep.subr.mxu0 0.0
      %409 = vmatpush1.msra.mxu0 %v332
      %410 = vmatprep.subr.mxu0 0.0
      %411 = vmatpush1.msra.mxu0 %v331
      %412 = vmatprep.subr.mxu0 0.0
      %413 = vmatpush1.msra.mxu0 %v330
      %414 = vmatprep.subr.mxu0 0.0
      %415 = vmatpush1.msra.mxu0 %v329
      %416 = vmatprep.subr.mxu0 0.0
      %417 = vmatpush1.msra.mxu0 %v328
      %418 = vmatprep.subr.mxu0 0.0
      %419 = vmatpush1.msra.mxu0 %v327
      %420 = vmatprep.subr.mxu0 0.0
      %421 = vmatpush1.msra.mxu0 %v326
      %422 = vmatprep.subr.mxu0 0.0
      %423 = vmatpush1.msra.mxu0 %v325
      %424 = vmatprep.subr.mxu0 0.0
      %425 = vmatpush1.msra.mxu0 %v324
      %426 = vmatprep.subr.mxu0 0.0
      %427 = vmatpush1.msra.mxu0 %v323
      %428 = vmatprep.subr.mxu0 0.0
      %429 = vmatpush1.msra.mxu0 %v322
      %430 = vmatprep.subr.mxu0 0.0
      %431 = vmatpush1.msra.mxu0 %v321
      %432 = vmatprep.subr.mxu0 0.0
      %433 = vmatpush1.msra.mxu0 %v320
      %434 = vmatprep.subr.mxu0 0.0
      %435 = vmatpush1.msra.mxu0 %v319
      %436 = vmatprep.subr.mxu0 0.0
      %437 = vmatpush1.msra.mxu0 %v318
      %438 = vmatprep.subr.mxu0 0.0
      %439 = vmatpush1.msra.mxu0 %v317
      %440 = vmatprep.subr.mxu0 0.0
      %441 = vmatpush2.msra.mxu0 0.0
      %442 = vmatprep.subr.mxu0 0.0
      %443 = vmatpush2.msra.mxu0 0.0
      %444 = vmatprep.subr.mxu0 0.0
      %445 = vmatpush2.msra.mxu0 0.0
      %446 = vmatprep.subr.mxu0 0.0
      %447 = vmatpush2.msra.mxu0 0.0
      %448 = vmatprep.subr.mxu0 0.0
      %449 = vmatpush2.msra.mxu0 0.0
      %450 = vmatprep.subr.mxu0 0.0
      %451 = vmatpush2.msra.mxu0 0.0
      %452 = vmatprep.subr.mxu0 0.0
      %453 = vmatpush2.msra.mxu0 0.0
      %454 = vmatprep.subr.mxu0 0.0
      %455 = vmatpush2.msra.mxu0 0.0
      %456 = vmatprep.subr.mxu0 0.0
      %457 = vmatpush2.msra.mxu0 0.0
      %458 = vmatprep.subr.mxu0 0.0
      %459 = vmatpush2.msra.mxu0 0.0
      %460 = vmatprep.subr.mxu0 0.0
      %461 = vmatpush2.msra.mxu0 0.0
      %462 = vmatprep.subr.mxu0 0.0
      %463 = vmatpush2.msra.mxu0 0.0
      %464 = vmatprep.subr.mxu0 0.0
      %465 = vmatpush2.msra.mxu0 0.0
      %466 = vmatprep.subr.mxu0 0.0
      %467 = vmatpush2.msra.mxu0 0.0
      %468 = vmatprep.subr.mxu0 0.0
      %469 = vmatpush2.msra.mxu0 0.0
      %470 = vmatprep.subr.mxu0 0.0
      %471 = vmatpush2.msra.mxu0 0.0
      %472 = vmatprep.mubr.f32.mxu0 0.0
      %473 = vmatmul.mubr.f32.gmra.mxu0 %v405
      %v474 = vpop.f32.mrf.mxu0
      %v475 = vadd.f32 0.0, %v474
      %v476 = vpop.f32.mrf.mxu0
      %477 = vdwg.mxu0
      %v478 = vadd.f32 %v407, %v475
      %479 = vst [vmem:[%s219 + $0x1] sm:$0x1] %v478
      %v480 = vld [vmem:[%s219 + $0x2] sm:$0x1]
      %481 = vmatprep.subr.mxu0 0.0
      %482 = vmatpush1.msra.mxu0 %v332
      %483 = vmatprep.subr.mxu0 0.0
      %484 = vmatpush1.msra.mxu0 %v331
      %485 = vmatprep.subr.mxu0 0.0
      %486 = vmatpush1.msra.mxu0 %v330
      %487 = vmatprep.subr.mxu0 0.0
      %488 = vmatpush1.msra.mxu0 %v329
      %489 = vmatprep.subr.mxu0 0.0
      %490 = vmatpush1.msra.mxu0 %v328
      %491 = vmatprep.subr.mxu0 0.0
      %492 = vmatpush1.msra.mxu0 %v327
      %493 = vmatprep.subr.mxu0 0.0
      %494 = vmatpush1.msra.mxu0 %v326
      %495 = vmatprep.subr.mxu0 0.0
      %496 = vmatpush1.msra.mxu0 %v325
      %497 = vmatprep.subr.mxu0 0.0
      %498 = vmatpush1.msra.mxu0 %v324
      %499 = vmatprep.subr.mxu0 0.0
      %500 = vmatpush1.msra.mxu0 %v323
      %501 = vmatprep.subr.mxu0 0.0
      %502 = vmatpush1.msra.mxu0 %v322
      %503 = vmatprep.subr.mxu0 0.0
      %504 = vmatpush1.msra.mxu0 %v321
      %505 = vmatprep.subr.mxu0 0.0
      %506 = vmatpush1.msra.mxu0 %v320
      %507 = vmatprep.subr.mxu0 0.0
      %508 = vmatpush1.msra.mxu0 %v319
      %509 = vmatprep.subr.mxu0 0.0
      %510 = vmatpush1.msra.mxu0 %v318
      %511 = vmatprep.subr.mxu0 0.0
      %512 = vmatpush1.msra.mxu0 %v317
      %513 = vmatprep.subr.mxu0 0.0
      %514 = vmatpush2.msra.mxu0 0.0
      %515 = vmatprep.subr.mxu0 0.0
      %516 = vmatpush2.msra.mxu0 0.0
      %517 = vmatprep.subr.mxu0 0.0
      %518 = vmatpush2.msra.mxu0 0.0
      %519 = vmatprep.subr.mxu0 0.0
      %520 = vmatpush2.msra.mxu0 0.0
      %521 = vmatprep.subr.mxu0 0.0
      %522 = vmatpush2.msra.mxu0 0.0
      %523 = vmatprep.subr.mxu0 0.0
      %524 = vmatpush2.msra.mxu0 0.0
      %525 = vmatprep.subr.mxu0 0.0
      %526 = vmatpush2.msra.mxu0 0.0
      %527 = vmatprep.subr.mxu0 0.0
      %528 = vmatpush2.msra.mxu0 0.0
      %529 = vmatprep.subr.mxu0 0.0
      %530 = vmatpush2.msra.mxu0 0.0
      %531 = vmatprep.subr.mxu0 0.0
      %532 = vmatpush2.msra.mxu0 0.0
      %533 = vmatprep.subr.mxu0 0.0
      %534 = vmatpush2.msra.mxu0 0.0
      %535 = vmatprep.subr.mxu0 0.0
      %536 = vmatpush2.msra.mxu0 0.0
      %537 = vmatprep.subr.mxu0 0.0
      %538 = vmatpush2.msra.mxu0 0.0
      %539 = vmatprep.subr.mxu0 0.0
      %540 = vmatpush2.msra.mxu0 0.0
      %541 = vmatprep.subr.mxu0 0.0
      %542 = vmatpush2.msra.mxu0 0.0
      %543 = vmatprep.subr.mxu0 0.0
      %544 = vmatpush2.msra.mxu0 0.0
      %545 = vmatprep.mubr.f32.mxu0 0.0
      %546 = vmatmul.mubr.f32.gmra.mxu0 %v478
      %v547 = vpop.f32.mrf.mxu0
      %v548 = vadd.f32 0.0, %v547
      %v549 = vpop.f32.mrf.mxu0
      %550 = vdwg.mxu0
      %v551 = vadd.f32 %v480, %v548
      %552 = vst [vmem:[%s219 + $0x2] sm:$0x1] %v551
      %v553 = vld [vmem:[%s219 + $0x3] sm:$0x1]
      %554 = vmatprep.subr.mxu0 0.0
      %555 = vmatpush1.msra.mxu0 %v332
      %556 = vmatprep.subr.mxu0 0.0
      %557 = vmatpush1.msra.mxu0 %v331
      %558 = vmatprep.subr.mxu0 0.0
      %559 = vmatpush1.msra.mxu0 %v330
      %560 = vmatprep.subr.mxu0 0.0
      %561 = vmatpush1.msra.mxu0 %v329
      %562 = vmatprep.subr.mxu0 0.0
      %563 = vmatpush1.msra.mxu0 %v328
      %564 = vmatprep.subr.mxu0 0.0
      %565 = vmatpush1.msra.mxu0 %v327
      %566 = vmatprep.subr.mxu0 0.0
      %567 = vmatpush1.msra.mxu0 %v326
      %568 = vmatprep.subr.mxu0 0.0
      %569 = vmatpush1.msra.mxu0 %v325
      %570 = vmatprep.subr.mxu0 0.0
      %571 = vmatpush1.msra.mxu0 %v324
      %572 = vmatprep.subr.mxu0 0.0
      %573 = vmatpush1.msra.mxu0 %v323
      %574 = vmatprep.subr.mxu0 0.0
      %575 = vmatpush1.msra.mxu0 %v322
      %576 = vmatprep.subr.mxu0 0.0
      %577 = vmatpush1.msra.mxu0 %v321
      %578 = vmatprep.subr.mxu0 0.0
      %579 = vmatpush1.msra.mxu0 %v320
      %580 = vmatprep.subr.mxu0 0.0
      %581 = vmatpush1.msra.mxu0 %v319
      %582 = vmatprep.subr.mxu0 0.0
      %583 = vmatpush1.msra.mxu0 %v318
      %584 = vmatprep.subr.mxu0 0.0
      %585 = vmatpush1.msra.mxu0 %v317
      %586 = vmatprep.subr.mxu0 0.0
      %587 = vmatpush2.msra.mxu0 0.0
      %588 = vmatprep.subr.mxu0 0.0
      %589 = vmatpush2.msra.mxu0 0.0
      %590 = vmatprep.subr.mxu0 0.0
      %591 = vmatpush2.msra.mxu0 0.0
      %592 = vmatprep.subr.mxu0 0.0
      %593 = vmatpush2.msra.mxu0 0.0
      %594 = vmatprep.subr.mxu0 0.0
      %595 = vmatpush2.msra.mxu0 0.0
      %596 = vmatprep.subr.mxu0 0.0
      %597 = vmatpush2.msra.mxu0 0.0
      %598 = vmatprep.subr.mxu0 0.0
      %599 = vmatpush2.msra.mxu0 0.0
      %600 = vmatprep.subr.mxu0 0.0
      %601 = vmatpush2.msra.mxu0 0.0
      %602 = vmatprep.subr.mxu0 0.0
      %603 = vmatpush2.msra.mxu0 0.0
      %604 = vmatprep.subr.mxu0 0.0
      %605 = vmatpush2.msra.mxu0 0.0
      %606 = vmatprep.subr.mxu0 0.0
      %607 = vmatpush2.msra.mxu0 0.0
      %608 = vmatprep.subr.mxu0 0.0
      %609 = vmatpush2.msra.mxu0 0.0
      %610 = vmatprep.subr.mxu0 0.0
      %611 = vmatpush2.msra.mxu0 0.0
      %612 = vmatprep.subr.mxu0 0.0
      %613 = vmatpush2.msra.mxu0 0.0
      %614 = vmatprep.subr.mxu0 0.0
      %615 = vmatpush2.msra.mxu0 0.0
      %616 = vmatprep.subr.mxu0 0.0
      %617 = vmatpush2.msra.mxu0 0.0
      %618 = vmatprep.mubr.f32.mxu0 0.0
      %619 = vmatmul.mubr.f32.gmra.mxu0 %v551
      %v620 = vpop.f32.mrf.mxu0
      %v621 = vadd.f32 0.0, %v620
      %v622 = vpop.f32.mrf.mxu0
      %623 = vdwg.mxu0
      %v624 = vadd.f32 %v553, %v621
      %625 = vst [vmem:[%s219 + $0x3] sm:$0x1] %v624
      %v626 = vld [vmem:[%s219 + $0x4] sm:$0x1]
      %627 = vmatprep.subr.mxu0 0.0
      %628 = vmatpush1.msra.mxu0 %v332
      %629 = vmatprep.subr.mxu0 0.0
      %630 = vmatpush1.msra.mxu0 %v331
      %631 = vmatprep.subr.mxu0 0.0
      %632 = vmatpush1.msra.mxu0 %v330
      %633 = vmatprep.subr.mxu0 0.0
      %634 = vmatpush1.msra.mxu0 %v329
      %635 = vmatprep.subr.mxu0 0.0
      %636 = vmatpush1.msra.mxu0 %v328
      %637 = vmatprep.subr.mxu0 0.0
      %638 = vmatpush1.msra.mxu0 %v327
      %639 = vmatprep.subr.mxu0 0.0
      %640 = vmatpush1.msra.mxu0 %v326
      %641 = vmatprep.subr.mxu0 0.0
      %642 = vmatpush1.msra.mxu0 %v325
      %643 = vmatprep.subr.mxu0 0.0
      %644 = vmatpush1.msra.mxu0 %v324
      %645 = vmatprep.subr.mxu0 0.0
      %646 = vmatpush1.msra.mxu0 %v323
      %647 = vmatprep.subr.mxu0 0.0
      %648 = vmatpush1.msra.mxu0 %v322
      %649 = vmatprep.subr.mxu0 0.0
      %650 = vmatpush1.msra.mxu0 %v321
      %651 = vmatprep.subr.mxu0 0.0
      %652 = vmatpush1.msra.mxu0 %v320
      %653 = vmatprep.subr.mxu0 0.0
      %654 = vmatpush1.msra.mxu0 %v319
      %655 = vmatprep.subr.mxu0 0.0
      %656 = vmatpush1.msra.mxu0 %v318
      %657 = vmatprep.subr.mxu0 0.0
      %658 = vmatpush1.msra.mxu0 %v317
      %659 = vmatprep.subr.mxu0 0.0
      %660 = vmatpush2.msra.mxu0 0.0
      %661 = vmatprep.subr.mxu0 0.0
      %662 = vmatpush2.msra.mxu0 0.0
      %663 = vmatprep.subr.mxu0 0.0
      %664 = vmatpush2.msra.mxu0 0.0
      %665 = vmatprep.subr.mxu0 0.0
      %666 = vmatpush2.msra.mxu0 0.0
      %667 = vmatprep.subr.mxu0 0.0
      %668 = vmatpush2.msra.mxu0 0.0
      %669 = vmatprep.subr.mxu0 0.0
      %670 = vmatpush2.msra.mxu0 0.0
      %671 = vmatprep.subr.mxu0 0.0
      %672 = vmatpush2.msra.mxu0 0.0
      %673 = vmatprep.subr.mxu0 0.0
      %674 = vmatpush2.msra.mxu0 0.0
      %675 = vmatprep.subr.mxu0 0.0
      %676 = vmatpush2.msra.mxu0 0.0
      %677 = vmatprep.subr.mxu0 0.0
      %678 = vmatpush2.msra.mxu0 0.0
      %679 = vmatprep.subr.mxu0 0.0
      %680 = vmatpush2.msra.mxu0 0.0
      %681 = vmatprep.subr.mxu0 0.0
      %682 = vmatpush2.msra.mxu0 0.0
      %683 = vmatprep.subr.mxu0 0.0
      %684 = vmatpush2.msra.mxu0 0.0
      %685 = vmatprep.subr.mxu0 0.0
      %686 = vmatpush2.msra.mxu0 0.0
      %687 = vmatprep.subr.mxu0 0.0
      %688 = vmatpush2.msra.mxu0 0.0
      %689 = vmatprep.subr.mxu0 0.0
      %690 = vmatpush2.msra.mxu0 0.0
      %691 = vmatprep.mubr.f32.mxu0 0.0
      %692 = vmatmul.mubr.f32.gmra.mxu0 %v624
      %v693 = vpop.f32.mrf.mxu0
      %v694 = vadd.f32 0.0, %v693
      %v695 = vpop.f32.mrf.mxu0
      %696 = vdwg.mxu0
      %v697 = vadd.f32 %v626, %v694
      %698 = vst [vmem:[%s219 + $0x4] sm:$0x1] %v697
      %v699 = vld [vmem:[%s219 + $0x5] sm:$0x1]
      %700 = vmatprep.subr.mxu0 0.0
      %701 = vmatpush1.msra.mxu0 %v332
      %702 = vmatprep.subr.mxu0 0.0
      %703 = vmatpush1.msra.mxu0 %v331
      %704 = vmatprep.subr.mxu0 0.0
      %705 = vmatpush1.msra.mxu0 %v330
      %706 = vmatprep.subr.mxu0 0.0
      %707 = vmatpush1.msra.mxu0 %v329
      %708 = vmatprep.subr.mxu0 0.0
      %709 = vmatpush1.msra.mxu0 %v328
      %710 = vmatprep.subr.mxu0 0.0
      %711 = vmatpush1.msra.mxu0 %v327
      %712 = vmatprep.subr.mxu0 0.0
      %713 = vmatpush1.msra.mxu0 %v326
      %714 = vmatprep.subr.mxu0 0.0
      %715 = vmatpush1.msra.mxu0 %v325
      %716 = vmatprep.subr.mxu0 0.0
      %717 = vmatpush1.msra.mxu0 %v324
      %718 = vmatprep.subr.mxu0 0.0
      %719 = vmatpush1.msra.mxu0 %v323
      %720 = vmatprep.subr.mxu0 0.0
      %721 = vmatpush1.msra.mxu0 %v322
      %722 = vmatprep.subr.mxu0 0.0
      %723 = vmatpush1.msra.mxu0 %v321
      %724 = vmatprep.subr.mxu0 0.0
      %725 = vmatpush1.msra.mxu0 %v320
      %726 = vmatprep.subr.mxu0 0.0
      %727 = vmatpush1.msra.mxu0 %v319
      %728 = vmatprep.subr.mxu0 0.0
      %729 = vmatpush1.msra.mxu0 %v318
      %730 = vmatprep.subr.mxu0 0.0
      %731 = vmatpush1.msra.mxu0 %v317
      %732 = vmatprep.subr.mxu0 0.0
      %733 = vmatpush2.msra.mxu0 0.0
      %734 = vmatprep.subr.mxu0 0.0
      %735 = vmatpush2.msra.mxu0 0.0
      %736 = vmatprep.subr.mxu0 0.0
      %737 = vmatpush2.msra.mxu0 0.0
      %738 = vmatprep.subr.mxu0 0.0
      %739 = vmatpush2.msra.mxu0 0.0
      %740 = vmatprep.subr.mxu0 0.0
      %741 = vmatpush2.msra.mxu0 0.0
      %742 = vmatprep.subr.mxu0 0.0
      %743 = vmatpush2.msra.mxu0 0.0
      %744 = vmatprep.subr.mxu0 0.0
      %745 = vmatpush2.msra.mxu0 0.0
      %746 = vmatprep.subr.mxu0 0.0
      %747 = vmatpush2.msra.mxu0 0.0
      %748 = vmatprep.subr.mxu0 0.0
      %749 = vmatpush2.msra.mxu0 0.0
      %750 = vmatprep.subr.mxu0 0.0
      %751 = vmatpush2.msra.mxu0 0.0
      %752 = vmatprep.subr.mxu0 0.0
      %753 = vmatpush2.msra.mxu0 0.0
      %754 = vmatprep.subr.mxu0 0.0
      %755 = vmatpush2.msra.mxu0 0.0
      %756 = vmatprep.subr.mxu0 0.0
      %757 = vmatpush2.msra.mxu0 0.0
      %758 = vmatprep.subr.mxu0 0.0
      %759 = vmatpush2.msra.mxu0 0.0
      %760 = vmatprep.subr.mxu0 0.0
      %761 = vmatpush2.msra.mxu0 0.0
      %762 = vmatprep.subr.mxu0 0.0
      %763 = vmatpush2.msra.mxu0 0.0
      %764 = vmatprep.mubr.f32.mxu0 0.0
      %765 = vmatmul.mubr.f32.gmra.mxu0 %v697
      %v766 = vpop.f32.mrf.mxu0
      %v767 = vadd.f32 0.0, %v766
      %v768 = vpop.f32.mrf.mxu0
      %769 = vdwg.mxu0
      %v770 = vadd.f32 %v699, %v767
      %771 = vst [vmem:[%s219 + $0x5] sm:$0x1] %v770
      %v772 = vld [vmem:[%s219 + $0x6] sm:$0x1]
      %773 = vmatprep.subr.mxu0 0.0
      %774 = vmatpush1.msra.mxu0 %v332
      %775 = vmatprep.subr.mxu0 0.0
      %776 = vmatpush1.msra.mxu0 %v331
      %777 = vmatprep.subr.mxu0 0.0
      %778 = vmatpush1.msra.mxu0 %v330
      %779 = vmatprep.subr.mxu0 0.0
      %780 = vmatpush1.msra.mxu0 %v329
      %781 = vmatprep.subr.mxu0 0.0
      %782 = vmatpush1.msra.mxu0 %v328
      %783 = vmatprep.subr.mxu0 0.0
      %784 = vmatpush1.msra.mxu0 %v327
      %785 = vmatprep.subr.mxu0 0.0
      %786 = vmatpush1.msra.mxu0 %v326
      %787 = vmatprep.subr.mxu0 0.0
      %788 = vmatpush1.msra.mxu0 %v325
      %789 = vmatprep.subr.mxu0 0.0
      %790 = vmatpush1.msra.mxu0 %v324
      %791 = vmatprep.subr.mxu0 0.0
      %792 = vmatpush1.msra.mxu0 %v323
      %793 = vmatprep.subr.mxu0 0.0
      %794 = vmatpush1.msra.mxu0 %v322
      %795 = vmatprep.subr.mxu0 0.0
      %796 = vmatpush1.msra.mxu0 %v321
      %797 = vmatprep.subr.mxu0 0.0
      %798 = vmatpush1.msra.mxu0 %v320
      %799 = vmatprep.subr.mxu0 0.0
      %800 = vmatpush1.msra.mxu0 %v319
      %801 = vmatprep.subr.mxu0 0.0
      %802 = vmatpush1.msra.mxu0 %v318
      %803 = vmatprep.subr.mxu0 0.0
      %804 = vmatpush1.msra.mxu0 %v317
      %805 = vmatprep.subr.mxu0 0.0
      %806 = vmatpush2.msra.mxu0 0.0
      %807 = vmatprep.subr.mxu0 0.0
      %808 = vmatpush2.msra.mxu0 0.0
      %809 = vmatprep.subr.mxu0 0.0
      %810 = vmatpush2.msra.mxu0 0.0
      %811 = vmatprep.subr.mxu0 0.0
      %812 = vmatpush2.msra.mxu0 0.0
      %813 = vmatprep.subr.mxu0 0.0
      %814 = vmatpush2.msra.mxu0 0.0
      %815 = vmatprep.subr.mxu0 0.0
      %816 = vmatpush2.msra.mxu0 0.0
      %817 = vmatprep.subr.mxu0 0.0
      %818 = vmatpush2.msra.mxu0 0.0
      %819 = vmatprep.subr.mxu0 0.0
      %820 = vmatpush2.msra.mxu0 0.0
      %821 = vmatprep.subr.mxu0 0.0
      %822 = vmatpush2.msra.mxu0 0.0
      %823 = vmatprep.subr.mxu0 0.0
      %824 = vmatpush2.msra.mxu0 0.0
      %825 = vmatprep.subr.mxu0 0.0
      %826 = vmatpush2.msra.mxu0 0.0
      %827 = vmatprep.subr.mxu0 0.0
      %828 = vmatpush2.msra.mxu0 0.0
      %829 = vmatprep.subr.mxu0 0.0
      %830 = vmatpush2.msra.mxu0 0.0
      %831 = vmatprep.subr.mxu0 0.0
      %832 = vmatpush2.msra.mxu0 0.0
      %833 = vmatprep.subr.mxu0 0.0
      %834 = vmatpush2.msra.mxu0 0.0
      %835 = vmatprep.subr.mxu0 0.0
      %836 = vmatpush2.msra.mxu0 0.0
      %837 = vmatprep.mubr.f32.mxu0 0.0
      %838 = vmatmul.mubr.f32.gmra.mxu0 %v770
      %v839 = vpop.f32.mrf.mxu0
      %v840 = vadd.f32 0.0, %v839
      %v841 = vpop.f32.mrf.mxu0
      %842 = vdwg.mxu0
      %v843 = vadd.f32 %v772, %v840
      %844 = vst [vmem:[%s219 + $0x6] sm:$0x1] %v843
      %v845 = vld [vmem:[%s219 + $0x7] sm:$0x1]
      %846 = vmatprep.subr.mxu0 0.0
      %847 = vmatpush1.msra.mxu0 %v332
      %848 = vmatprep.subr.mxu0 0.0
      %849 = vmatpush1.msra.mxu0 %v331
      %850 = vmatprep.subr.mxu0 0.0
      %851 = vmatpush1.msra.mxu0 %v330
      %852 = vmatprep.subr.mxu0 0.0
      %853 = vmatpush1.msra.mxu0 %v329
      %854 = vmatprep.subr.mxu0 0.0
      %855 = vmatpush1.msra.mxu0 %v328
      %856 = vmatprep.subr.mxu0 0.0
      %857 = vmatpush1.msra.mxu0 %v327
      %858 = vmatprep.subr.mxu0 0.0
      %859 = vmatpush1.msra.mxu0 %v326
      %860 = vmatprep.subr.mxu0 0.0
      %861 = vmatpush1.msra.mxu0 %v325
      %862 = vmatprep.subr.mxu0 0.0
      %863 = vmatpush1.msra.mxu0 %v324
      %864 = vmatprep.subr.mxu0 0.0
      %865 = vmatpush1.msra.mxu0 %v323
      %866 = vmatprep.subr.mxu0 0.0
      %867 = vmatpush1.msra.mxu0 %v322
      %868 = vmatprep.subr.mxu0 0.0
      %869 = vmatpush1.msra.mxu0 %v321
      %870 = vmatprep.subr.mxu0 0.0
      %871 = vmatpush1.msra.mxu0 %v320
      %872 = vmatprep.subr.mxu0 0.0
      %873 = vmatpush1.msra.mxu0 %v319
      %874 = vmatprep.subr.mxu0 0.0
      %875 = vmatpush1.msra.mxu0 %v318
      %876 = vmatprep.subr.mxu0 0.0
      %877 = vmatpush1.msra.mxu0 %v317
      %878 = vmatprep.subr.mxu0 0.0
      %879 = vmatpush2.msra.mxu0 0.0
      %880 = vmatprep.subr.mxu0 0.0
      %881 = vmatpush2.msra.mxu0 0.0
      %882 = vmatprep.subr.mxu0 0.0
      %883 = vmatpush2.msra.mxu0 0.0
      %884 = vmatprep.subr.mxu0 0.0
      %885 = vmatpush2.msra.mxu0 0.0
      %886 = vmatprep.subr.mxu0 0.0
      %887 = vmatpush2.msra.mxu0 0.0
      %888 = vmatprep.subr.mxu0 0.0
      %889 = vmatpush2.msra.mxu0 0.0
      %890 = vmatprep.subr.mxu0 0.0
      %891 = vmatpush2.msra.mxu0 0.0
      %892 = vmatprep.subr.mxu0 0.0
      %893 = vmatpush2.msra.mxu0 0.0
      %894 = vmatprep.subr.mxu0 0.0
      %895 = vmatpush2.msra.mxu0 0.0
      %896 = vmatprep.subr.mxu0 0.0
      %897 = vmatpush2.msra.mxu0 0.0
      %898 = vmatprep.subr.mxu0 0.0
      %899 = vmatpush2.msra.mxu0 0.0
      %900 = vmatprep.subr.mxu0 0.0
      %901 = vmatpush2.msra.mxu0 0.0
      %902 = vmatprep.subr.mxu0 0.0
      %903 = vmatpush2.msra.mxu0 0.0
      %904 = vmatprep.subr.mxu0 0.0
      %905 = vmatpush2.msra.mxu0 0.0
      %906 = vmatprep.subr.mxu0 0.0
      %907 = vmatpush2.msra.mxu0 0.0
      %908 = vmatprep.subr.mxu0 0.0
      %909 = vmatpush2.msra.mxu0 0.0
      %910 = vmatprep.mubr.f32.mxu0 0.0
      %911 = vmatmul.mubr.f32.gmra.mxu0 %v843
      %v912 = vpop.f32.mrf.mxu0
      %v913 = vadd.f32 0.0, %v912
      %v914 = vpop.f32.mrf.mxu0
      %915 = vdwg.mxu0
      %v916 = vadd.f32 %v845, %v913
      %917 = vst [vmem:[%s219 + $0x7] sm:$0x1] %v916
      %918 = vst [vmem:[#allocation2] sm:$0x1] %v916
      %v919 = vlaneseq
      %v920 = vand.u32 %v919, 127
      %v921 = vld [vmem:[%s219] sm:$0xff]
      %vm922 = vcmp.lt.s32.totalorder %v920, 28
      %v923 = vxor.u32 %v921, 2147483648
      %v924 = vmul.f32 %v923, 1.442695
      %v925 = vpow.pop %v924
      %v926 = vadd.f32 %v925, 1.0
      %v927 = vrcp.pop %v926
      %v928 = vmul.f32 1.0, %v927
      %v929 = vsel %vm922, 1, 0
      %vm930 = vcmp.eq.s32.totalorder %v929, 1
      %v931 = vsel %vm930, %v921, %v928
      %932 = vst [vmem:[%s219] sm:$0xff] %v931
      %p933 = scmp.lt.s32.totalorder %s16, 1
      %s934 = scalar_select %p933, %s16, 1
      %s935 = smul.addr %s934, 8
      %s936 = scalar_lea.vmem %s5, %s935
      // Predicated region
      $region45: #{rnn_forward.1} parent=39 // pred_check
        %p937 = pneg %p144
      $region46: #{rnn_forward.1} parent=39 // pred_check_branch
        %939 = sbr.rel (%p937) target = $region48
      $region47: #{rnn_forward.1} parent=39 // pred_region
        _
      $region48: #{rnn_forward.1} parent=39 // pred_fallthru
        _
    $region40: #{rnn_forward.1} parent=5 // pred_fallthru
      _
    %p940 = scmp.le.s32.totalorder 2, %s11
    // Predicated region
    $region49: #{rnn_forward.1} parent=5 // pred_check
      %p941 = pneg %p940
    $region50: #{rnn_forward.1} parent=5 // pred_check_branch
      %943 = sbr.rel (%p941) target = $region52
    $region51: #{rnn_forward.1} parent=5 // pred_region
      %s944 = ssub.s32 %s11, 2
      // Predicated region
      $region53: #{rnn_forward.1} parent=51 // pred_check
        %p945 = pneg %p150
      $region54: #{rnn_forward.1} parent=51 // pred_check_branch
        %947 = sbr.rel (%p945) target = $region56
      $region55: #{rnn_forward.1} parent=51 // pred_region
        %p948 = scmp.lt.s32.totalorder %s17, 1
        %s949 = scalar_select %p948, %s17, 1
        %s950 = smul.addr %s949, 8
        %s951 = scalar_lea.vmem %s5, %s950
      $region56: #{rnn_forward.1} parent=51 // pred_fallthru
        _
    $region52: #{rnn_forward.1} parent=5 // pred_fallthru
      _
  $region6: #{rnn_forward.1} parent=0 // loop_footer
    %s15 = sadd.s32 1, %s11
  $region7: #{rnn_forward.1} parent=0 // loop_footer_branch
    %10 = sbr.rel target = $region3
  $region8: #{rnn_forward.1} parent=0 // loop_exit
    _

</llo_original>
